<compile_context>
chip_gen: v5e
topology: v5e:2x2
jax: 0.10.0
libtpu: 0.0.40
codegen_flags: <defaults>
</compile_context>

<pallas_src>
import functools

import jax
import jax.numpy as jnp
from jax.experimental import pallas as pl
from jax.experimental.pallas import tpu as pltpu


# Logical / padded layer sizes (lane-dense multiples of 128).
_H1, _H1P = 300, 384
_H2, _H2P = 121, 128
_H3, _H3P = 5, 128


def _round_up(x, m):
    return (x + m - 1) // m * m


def _vmem_limit_bytes():
    """3/4 of physical VMEM, capped at 96 MiB (48 MiB on v7x, 96 MiB on v5e/v6e)."""
    try:
        cap = int(pltpu.get_tpu_info().vmem_capacity_bytes)
    except Exception:  # pragma: no cover - conservative fallback
        cap = 64 * 1024 * 1024
    return min(cap * 3 // 4, 96 * 1024 * 1024)


# ---------------------------------------------------------------------------
# Pallas kernel: one batch tile per grid step, all weights VMEM-resident.
# ---------------------------------------------------------------------------
def _brain_dqn_kernel(s_ref, a_ref,
                      w1s_ref, w1a_ref, b1_ref,
                      w2_ref, b2_ref,
                      w3_ref, b3_ref,
                      w4_ref, b4_ref,
                      out_ref):
    # Layer 1: sigmoid(s @ W1_s + a @ W1_a + b1); bf16 operands, f32 accumulate.
    # Contraction dims are exactly state_dim / action_dim (no padded lanes).
    h = (jnp.dot(s_ref[...], w1s_ref[...], preferred_element_type=jnp.float32)
         + jnp.dot(a_ref[...], w1a_ref[...], preferred_element_type=jnp.float32)
         + b1_ref[...])
    h = jax.nn.sigmoid(h)                                    # [TB, 384] f32

    # Layer 2 (f32; tiny, hidden under layer 1).  Padded h lanes (>=300) hold
    # sigmoid(0)=0.5 but multiply zero weight rows, so they never contribute.
    h = jnp.dot(h, w2_ref[...], preferred_element_type=jnp.float32) + b2_ref[...]
    h = jax.nn.sigmoid(h)                                    # [TB, 128]

    # Layer 3.
    h = jnp.dot(h, w3_ref[...], preferred_element_type=jnp.float32) + b3_ref[...]
    h = jax.nn.sigmoid(h)                                    # [TB, 128]

    # Layer 4 (5 -> 1) on VPU + XLU lane-reduce instead of a tiny MXU matmul.
    q = jnp.sum(h * w4_ref[...], axis=-1, keepdims=True) + b4_ref[...]   # [TB, 1]

    # Narrow store: out array is [B, 1]; 128x less writeback than a lane-broadcast
    # slab, and the masked store cost is negligible vs. the layer-1 matmul.
    out_ref[...] = q


# ---------------------------------------------------------------------------
# Wrapper
# ---------------------------------------------------------------------------
@functools.partial(jax.jit, static_argnames=("tile_b",))
def brain_dqn_forward(s, a, params, tile_b=1024):
    """Compute Q(s, a) with the Pallas kernel.

    s: [B, state_dim], a: [B, action_dim]; params from pack_params().
    """
    B, state_dim = s.shape
    action_dim = a.shape[1]

    # bf16 input stream (ideally the caller already provides bf16 so this cast
    # fuses into the producer instead of materializing a copy).
    s = s.astype(jnp.bfloat16)
    a = a.astype(jnp.bfloat16)

    # Clamp the batch tile for tiny batches; keep it a multiple of 8 (sublanes).
    tile_b = min(tile_b, _round_up(B, 8))
    b_pad = _round_up(B, tile_b)
    if b_pad != B:
        s = jnp.pad(s, ((0, b_pad - B), (0, 0)))
        a = jnp.pad(a, ((0, b_pad - B), (0, 0)))

    grid = (b_pad // tile_b,)

    def _resident(arr):  # weights/biases: same block every step -> stay in VMEM
        return pl.BlockSpec(arr.shape, lambda i: (0, 0))

    in_specs = [
        pl.BlockSpec((tile_b, state_dim), lambda i: (i, 0)),   # batch-tiled s
        pl.BlockSpec((tile_b, action_dim), lambda i: (i, 0)),  # batch-tiled a
        _resident(params["w1s"]), _resident(params["w1a"]), _resident(params["b1"]),
        _resident(params["w2"]), _resident(params["b2"]),
        _resident(params["w3"]), _resident(params["b3"]),
        _resident(params["w4"]), _resident(params["b4"]),
    ]
    out_specs = pl.BlockSpec((tile_b, 1), lambda i: (i, 0))

    out = pl.pallas_call(
        _brain_dqn_kernel,
        out_shape=jax.ShapeDtypeStruct((b_pad, 1), jnp.float32),
        grid=grid,
        in_specs=in_specs,
        out_specs=out_specs,
        compiler_params=pltpu.CompilerParams(
            dimension_semantics=("parallel",),
            vmem_limit_bytes=_vmem_limit_bytes()),
    )(s, a,
      params["w1s"], params["w1a"], params["b1"],
      params["w2"], params["b2"],
      params["w3"], params["b3"],
      params["w4"], params["b4"])

    return out[:B]


# ---------------------------------------------------------------------------
# Parameter init (torch layout) and padded packing for the kernel.
# ---------------------------------------------------------------------------
def _xavier_uniform(key, out_dim, in_dim):
    bound = jnp.sqrt(6.0 / (in_dim + out_dim))
    return jax.random.uniform(key, (out_dim, in_dim), jnp.float32, -bound, bound)


def _torch_bias(key, out_dim, in_dim):
    bound = 1.0 / jnp.sqrt(in_dim)
    return jax.random.uniform(key, (out_dim,), jnp.float32, -bound, bound)


def init_raw_params(key, state_dim, action_dim):
    """Torch-layout ([out, in]) weights + bias vectors, Xavier-uniform init."""
    in_size = state_dim + action_dim
    dims = [(in_size, _H1), (_H1, _H2), (_H2, _H3), (_H3, 1)]
    keys = jax.random.split(key, 2 * len(dims))
    raw = {}
    for i, (fi, fo) in enumerate(dims):
        raw[f"w{i + 1}"] = _xavier_uniform(keys[2 * i], fo, fi)
        raw[f"b{i + 1}"] = _torch_bias(keys[2 * i + 1], fo, fi)
    return raw


def pack_params(raw, state_dim, action_dim):
    """Transpose to [in, out], zero-pad output dims to lane-dense multiples of
    128, split W1 into the state / action halves, and store W1 in bf16."""

    def pad_cols(w_t, cols, dtype=jnp.float32):  # w_t: [in, out]
        z = jnp.zeros((w_t.shape[0], cols), jnp.float32)
        return z.at[:, : w_t.shape[1]].set(w_t).astype(dtype)

    def pad_w(w_t, rows, cols):  # zero rows beyond the real fan-in (exactness)
        z = jnp.zeros((rows, cols), jnp.float32)
        return z.at[: w_t.shape[0], : w_t.shape[1]].set(w_t)

    def pad_b(b, cols):
        return jnp.zeros((1, cols), jnp.float32).at[0, : b.shape[0]].set(b)

    w1 = raw["w1"]                    # [300, state_dim + action_dim]
    w1s = w1[:, :state_dim].T         # [state_dim, 300]
    w1a = w1[:, state_dim:].T         # [action_dim, 300]

    return {
        # Layer 1 weights in bf16 (dominant DMA / MXU operand); f32 accumulate in-kernel.
        "w1s": pad_cols(w1s, _H1P, jnp.bfloat16),
        "w1a": pad_cols(w1a, _H1P, jnp.bfloat16),
        "b1": pad_b(raw["b1"], _H1P),
        # Layers 2-4 stay f32 (tiny, resident, filler under layer 1).
        "w2": pad_w(raw["w2"].T, _H1P, _H2P), "b2": pad_b(raw["b2"], _H2P),
        "w3": pad_w(raw["w3"].T, _H2P, _H3P), "b3": pad_b(raw["b3"], _H3P),
        "w4": pad_b(raw["w4"][0], _H3P),      # [1, 128] row, lanes >= 5 are zero
        "b4": raw["b4"].reshape(1, 1),
    }


# ---------------------------------------------------------------------------
# Pure-JAX references.
# ---------------------------------------------------------------------------
def reference_forward(s, a, raw):
    """Exact f32 mirror of the PyTorch forward."""
    x = jnp.concatenate([s, a], axis=-1)
    h = jax.nn.sigmoid(x @ raw["w1"].T + raw["b1"])
    h = jax.nn.sigmoid(h @ raw["w2"].T + raw["b2"])
    h = jax.nn.sigmoid(h @ raw["w3"].T + raw["b3"])
    return h @ raw["w4"].T + raw["b4"]


def reference_forward_bf16_l1(s, a, raw):
    """Same mixed precision as the kernel: layer-1 operands rounded to bf16
    (f32 accumulation), layers 2-4 in f32."""
    bf = lambda t: t.astype(jnp.bfloat16).astype(jnp.float32)
    x = jnp.concatenate([bf(s), bf(a)], axis=-1)
    h = jax.nn.sigmoid(x @ bf(raw["w1"]).T + raw["b1"])
    h = jax.nn.sigmoid(h @ raw["w2"].T + raw["b2"])
    h = jax.nn.sigmoid(h @ raw["w3"].T + raw["b3"])
    return h @ raw["w4"].T + raw["b4"]


if __name__ == "__main__":
    # Small synthetic sizes consistent with the module (action_dim = len(WASD) = 5).
    BATCH, STATE_DIM, ACTION_DIM = 2, 59, 5

    key = jax.random.PRNGKey(0)
    k_param, k_s = jax.random.split(key)

    raw = init_raw_params(k_param, STATE_DIM, ACTION_DIM)
    params = pack_params(raw, STATE_DIM, ACTION_DIM)

    s = jax.random.normal(k_s, (BATCH, STATE_DIM), jnp.float32)
    # One-hot action vectors, like torch.eye rows in maxa().
    a = jax.nn.one_hot(jnp.arange(BATCH) % ACTION_DIM, ACTION_DIM, dtype=jnp.float32)

    q = brain_dqn_forward(s, a, params)
    jax.block_until_ready(q)

    assert q.shape == (BATCH, 1)
    # Tight check vs. a reference with identical bf16 layer-1 quantization.
    q_ref_q = reference_forward_bf16_l1(s, a, raw)
    assert jnp.allclose(q, q_ref_q, atol=2e-3, rtol=2e-3), (q, q_ref_q)
    # Loose sanity check vs. the exact f32 reference (bf16 quantization noise only).
    q_ref = reference_forward(s, a, raw)
    assert jnp.allclose(q, q_ref, atol=5e-2, rtol=5e-2), (q, q_ref)

    print("KERNEL_OK")
</pallas_src>

<mosaic_0001>
module attributes {stable_mosaic.version = 11 : i64} {
  func.func @_brain_dqn_kernel(%arg0: i32, %arg1: memref<8x59xbf16, #tpu.memory_space<vmem>>, %arg2: memref<8x5xbf16, #tpu.memory_space<vmem>>, %arg3: memref<59x384xbf16, #tpu.memory_space<vmem>>, %arg4: memref<5x384xbf16, #tpu.memory_space<vmem>>, %arg5: memref<1x384xf32, #tpu.memory_space<vmem>>, %arg6: memref<384x128xf32, #tpu.memory_space<vmem>>, %arg7: memref<1x128xf32, #tpu.memory_space<vmem>>, %arg8: memref<128x128xf32, #tpu.memory_space<vmem>>, %arg9: memref<1x128xf32, #tpu.memory_space<vmem>>, %arg10: memref<1x128xf32, #tpu.memory_space<vmem>>, %arg11: memref<1x1xf32, #tpu.memory_space<vmem>>, %arg12: memref<8x1xf32, #tpu.memory_space<vmem>>) attributes {dimension_semantics = [#tpu.dimension_semantics<parallel>], iteration_bounds = array<i64: 1>, scalar_prefetch = 0 : i64, scratch_operands = 0 : i64, tpu.core_type = #tpu.core_type<tc>, window_params = [{transform_indices = @transform_0, window_bounds = array<i64: 8, 59>}, {transform_indices = @transform_1, window_bounds = array<i64: 8, 5>}, {pipeline_mode = #tpu.pipeline_mode<synchronous>, transform_indices = @transform_2, window_bounds = array<i64: 59, 384>}, {pipeline_mode = #tpu.pipeline_mode<synchronous>, transform_indices = @transform_3, window_bounds = array<i64: 5, 384>}, {pipeline_mode = #tpu.pipeline_mode<synchronous>, transform_indices = @transform_4, window_bounds = array<i64: 1, 384>}, {pipeline_mode = #tpu.pipeline_mode<synchronous>, transform_indices = @transform_5, window_bounds = array<i64: 384, 128>}, {pipeline_mode = #tpu.pipeline_mode<synchronous>, transform_indices = @transform_6, window_bounds = array<i64: 1, 128>}, {pipeline_mode = #tpu.pipeline_mode<synchronous>, transform_indices = @transform_7, window_bounds = array<i64: 128, 128>}, {pipeline_mode = #tpu.pipeline_mode<synchronous>, transform_indices = @transform_8, window_bounds = array<i64: 1, 128>}, {pipeline_mode = #tpu.pipeline_mode<synchronous>, transform_indices = @transform_9, window_bounds = array<i64: 1, 128>}, {pipeline_mode = #tpu.pipeline_mode<synchronous>, transform_indices = @transform_10, window_bounds = array<i64: 1, 1>}, {transform_indices = @transform_11, window_bounds = array<i64: 8, 1>}]} {
    %c0 = arith.constant 0 : index
    %c0_0 = arith.constant 0 : index
    %0 = vector.load %arg1[%c0, %c0_0] : memref<8x59xbf16, #tpu.memory_space<vmem>>, vector<8x59xbf16>
    %c0_1 = arith.constant 0 : index
    %c0_2 = arith.constant 0 : index
    %1 = vector.load %arg3[%c0_1, %c0_2] : memref<59x384xbf16, #tpu.memory_space<vmem>>, vector<59x384xbf16>
    %cst = arith.constant dense<0.000000e+00> : vector<8x384xf32>
    %2 = tpu.matmul %0, %1, %cst {dimension_numbers = #tpu.dot_dimension_numbers<[1], [0], [0], [1], [0, 0, 1, 1], [], []>} : vector<8x59xbf16>, vector<59x384xbf16>, vector<8x384xf32> -> vector<8x384xf32>
    %c0_3 = arith.constant 0 : index
    %c0_4 = arith.constant 0 : index
    %3 = vector.load %arg2[%c0_3, %c0_4] : memref<8x5xbf16, #tpu.memory_space<vmem>>, vector<8x5xbf16>
    %c0_5 = arith.constant 0 : index
    %c0_6 = arith.constant 0 : index
    %4 = vector.load %arg4[%c0_5, %c0_6] : memref<5x384xbf16, #tpu.memory_space<vmem>>, vector<5x384xbf16>
    %cst_7 = arith.constant dense<0.000000e+00> : vector<8x384xf32>
    %5 = tpu.matmul %3, %4, %cst_7 {dimension_numbers = #tpu.dot_dimension_numbers<[1], [0], [0], [1], [0, 0, 1, 1], [], []>} : vector<8x5xbf16>, vector<5x384xbf16>, vector<8x384xf32> -> vector<8x384xf32>
    %6 = arith.addf %2, %5 : vector<8x384xf32>
    %c0_8 = arith.constant 0 : index
    %c0_9 = arith.constant 0 : index
    %7 = vector.load %arg5[%c0_8, %c0_9] : memref<1x384xf32, #tpu.memory_space<vmem>>, vector<1x384xf32>
    %8 = vector.broadcast %7 : vector<1x384xf32> to vector<8x384xf32>
    %9 = arith.addf %6, %8 : vector<8x384xf32>
    %10 = arith.negf %9 : vector<8x384xf32>
    %11 = math.exp %10 : vector<8x384xf32>
    %cst_10 = arith.constant 1.000000e+00 : f32
    %12 = vector.broadcast %cst_10 : f32 to vector<8x384xf32>
    %13 = arith.addf %12, %11 : vector<8x384xf32>
    %14 = arith.divf %12, %13 : vector<8x384xf32>
    %c0_11 = arith.constant 0 : index
    %c0_12 = arith.constant 0 : index
    %15 = vector.load %arg6[%c0_11, %c0_12] : memref<384x128xf32, #tpu.memory_space<vmem>>, vector<384x128xf32>
    %cst_13 = arith.constant dense<0.000000e+00> : vector<8x128xf32>
    %16 = tpu.matmul %14, %15, %cst_13 {dimension_numbers = #tpu.dot_dimension_numbers<[1], [0], [0], [1], [0, 0, 1, 1], [], []>} : vector<8x384xf32>, vector<384x128xf32>, vector<8x128xf32> -> vector<8x128xf32>
    %c0_14 = arith.constant 0 : index
    %c0_15 = arith.constant 0 : index
    %17 = vector.load %arg7[%c0_14, %c0_15] : memref<1x128xf32, #tpu.memory_space<vmem>>, vector<1x128xf32>
    %18 = vector.broadcast %17 : vector<1x128xf32> to vector<8x128xf32>
    %19 = arith.addf %16, %18 : vector<8x128xf32>
    %20 = arith.negf %19 : vector<8x128xf32>
    %21 = math.exp %20 : vector<8x128xf32>
    %cst_16 = arith.constant 1.000000e+00 : f32
    %22 = vector.broadcast %cst_16 : f32 to vector<8x128xf32>
    %23 = arith.addf %22, %21 : vector<8x128xf32>
    %24 = arith.divf %22, %23 : vector<8x128xf32>
    %c0_17 = arith.constant 0 : index
    %c0_18 = arith.constant 0 : index
    %25 = vector.load %arg8[%c0_17, %c0_18] : memref<128x128xf32, #tpu.memory_space<vmem>>, vector<128x128xf32>
    %cst_19 = arith.constant dense<0.000000e+00> : vector<8x128xf32>
    %26 = tpu.matmul %24, %25, %cst_19 {dimension_numbers = #tpu.dot_dimension_numbers<[1], [0], [0], [1], [0, 0, 1, 1], [], []>} : vector<8x128xf32>, vector<128x128xf32>, vector<8x128xf32> -> vector<8x128xf32>
    %c0_20 = arith.constant 0 : index
    %c0_21 = arith.constant 0 : index
    %27 = vector.load %arg9[%c0_20, %c0_21] : memref<1x128xf32, #tpu.memory_space<vmem>>, vector<1x128xf32>
    %28 = vector.broadcast %27 : vector<1x128xf32> to vector<8x128xf32>
    %29 = arith.addf %26, %28 : vector<8x128xf32>
    %30 = arith.negf %29 : vector<8x128xf32>
    %31 = math.exp %30 : vector<8x128xf32>
    %cst_22 = arith.constant 1.000000e+00 : f32
    %32 = vector.broadcast %cst_22 : f32 to vector<8x128xf32>
    %33 = arith.addf %32, %31 : vector<8x128xf32>
    %34 = arith.divf %32, %33 : vector<8x128xf32>
    %c0_23 = arith.constant 0 : index
    %c0_24 = arith.constant 0 : index
    %35 = vector.load %arg10[%c0_23, %c0_24] : memref<1x128xf32, #tpu.memory_space<vmem>>, vector<1x128xf32>
    %36 = vector.broadcast %35 : vector<1x128xf32> to vector<8x128xf32>
    %37 = arith.mulf %34, %36 : vector<8x128xf32>
    %cst_25 = arith.constant dense<0.000000e+00> : vector<8xf32>
    %38 = vector.multi_reduction <add>, %37, %cst_25 [1] : vector<8x128xf32> to vector<8xf32>
    %39 = vector.shape_cast %38 : vector<8xf32> to vector<8x1xf32>
    %c0_26 = arith.constant 0 : index
    %c0_27 = arith.constant 0 : index
    %40 = vector.load %arg11[%c0_26, %c0_27] : memref<1x1xf32, #tpu.memory_space<vmem>>, vector<1x1xf32>
    %41 = vector.broadcast %40 : vector<1x1xf32> to vector<8x1xf32>
    %42 = arith.addf %39, %41 : vector<8x1xf32>
    %c0_28 = arith.constant 0 : index
    %c0_29 = arith.constant 0 : index
    %43 = vector.load %arg12[%c0_28, %c0_29] : memref<8x1xf32, #tpu.memory_space<vmem>>, vector<8x1xf32>
    tpu.vector_store %arg12[%c0_28, %c0_29], %42 {strides = array<i32>} : memref<8x1xf32, #tpu.memory_space<vmem>>, vector<8x1xf32>,
    return
  }
  func.func @transform_0(%arg0: i32) -> (i32, i32) {
    %c0_i32 = arith.constant 0 : i32
    %c0_i32_0 = arith.constant 0 : i32
    return %arg0, %c0_i32 : i32, i32
  }
  func.func @transform_1(%arg0: i32) -> (i32, i32) {
    %c0_i32 = arith.constant 0 : i32
    %c0_i32_0 = arith.constant 0 : i32
    return %arg0, %c0_i32 : i32, i32
  }
  func.func @transform_2(%arg0: i32) -> (i32, i32) {
    %c0_i32 = arith.constant 0 : i32
    %c0_i32_0 = arith.constant 0 : i32
    %c0_i32_1 = arith.constant 0 : i32
    return %c0_i32, %c0_i32_0 : i32, i32
  }
  func.func @transform_3(%arg0: i32) -> (i32, i32) {
    %c0_i32 = arith.constant 0 : i32
    %c0_i32_0 = arith.constant 0 : i32
    %c0_i32_1 = arith.constant 0 : i32
    return %c0_i32, %c0_i32_0 : i32, i32
  }
  func.func @transform_4(%arg0: i32) -> (i32, i32) {
    %c0_i32 = arith.constant 0 : i32
    %c0_i32_0 = arith.constant 0 : i32
    %c0_i32_1 = arith.constant 0 : i32
    return %c0_i32, %c0_i32_0 : i32, i32
  }
  func.func @transform_5(%arg0: i32) -> (i32, i32) {
    %c0_i32 = arith.constant 0 : i32
    %c0_i32_0 = arith.constant 0 : i32
    %c0_i32_1 = arith.constant 0 : i32
    return %c0_i32, %c0_i32_0 : i32, i32
  }
  func.func @transform_6(%arg0: i32) -> (i32, i32) {
    %c0_i32 = arith.constant 0 : i32
    %c0_i32_0 = arith.constant 0 : i32
    %c0_i32_1 = arith.constant 0 : i32
    return %c0_i32, %c0_i32_0 : i32, i32
  }
  func.func @transform_7(%arg0: i32) -> (i32, i32) {
    %c0_i32 = arith.constant 0 : i32
    %c0_i32_0 = arith.constant 0 : i32
    %c0_i32_1 = arith.constant 0 : i32
    return %c0_i32, %c0_i32_0 : i32, i32
  }
  func.func @transform_8(%arg0: i32) -> (i32, i32) {
    %c0_i32 = arith.constant 0 : i32
    %c0_i32_0 = arith.constant 0 : i32
    %c0_i32_1 = arith.constant 0 : i32
    return %c0_i32, %c0_i32_0 : i32, i32
  }
  func.func @transform_9(%arg0: i32) -> (i32, i32) {
    %c0_i32 = arith.constant 0 : i32
    %c0_i32_0 = arith.constant 0 : i32
    %c0_i32_1 = arith.constant 0 : i32
    return %c0_i32, %c0_i32_0 : i32, i32
  }
  func.func @transform_10(%arg0: i32) -> (i32, i32) {
    %c0_i32 = arith.constant 0 : i32
    %c0_i32_0 = arith.constant 0 : i32
    %c0_i32_1 = arith.constant 0 : i32
    return %c0_i32, %c0_i32_0 : i32, i32
  }
  func.func @transform_11(%arg0: i32) -> (i32, i32) {
    %c0_i32 = arith.constant 0 : i32
    %c0_i32_0 = arith.constant 0 : i32
    return %arg0, %c0_i32 : i32, i32
  }
}

</mosaic_0001>

<llo_original>
// kernel: brain_dqn_forward.1
$region0: #{brain_dqn_forward.1}
  #allocation0 [shape = 'u32[]', space=smem, size = 0x4, offset = 0x4, fixed_abs, tag = 'smem constant byte address 0x4 - core index']
  #allocation1 [shape = 'u32[72,128]{1,0:T(1,128)}', space=vmem, size = 0x9000, scoped, tag = 'internal scratch']
  #allocation2 [shape = 'f32[1,1]{1,0:T(1,128)S(1)}', space=vmem, size = 0x200, scoped, tag = 'scoped memory for brain_dqn_forward.1']
  %s0 = inlined_call_operand.vmem [shape: bf16[8,59], index: 0, kind: input, shape index: {}]
  %s1 = inlined_call_operand.vmem [shape: bf16[8,5], index: 1, kind: input, shape index: {}]
  %s2 = inlined_call_operand.hbm [shape: bf16[59,384], index: 2, kind: input, shape index: {}]
  %s3 = inlined_call_operand.vmem [shape: bf16[5,384], index: 3, kind: input, shape index: {}]
  %s4 = inlined_call_operand.vmem [shape: f32[1,384], index: 4, kind: input, shape index: {}]
  %s5 = inlined_call_operand.hbm [shape: f32[384,128], index: 5, kind: input, shape index: {}]
  %s6 = inlined_call_operand.vmem [shape: f32[1,128], index: 6, kind: input, shape index: {}]
  %s7 = inlined_call_operand.hbm [shape: f32[128,128], index: 7, kind: input, shape index: {}]
  %s8 = inlined_call_operand.vmem [shape: f32[1,128], index: 8, kind: input, shape index: {}]
  %s9 = inlined_call_operand.vmem [shape: f32[1,128], index: 9, kind: input, shape index: {}]
  %s10 = inlined_call_operand.<no memory space> [shape: f32[1,1], index: 10, kind: input, shape index: {}]
  %s11 = inlined_call_operand.vmem [shape: f32[8,1], index: 11, kind: output, shape index: {}]
  %s12 = sld [smem:[#allocation0]]
  $region66: #{brain_dqn_forward.1} parent=0
    _
  %s14 = ssub.s32 1, %s12
  %s15 = scalar_select 0, %s14, %s12
  %v16 = vstv %s10
  %17 = vst [vmem:[#allocation2] sm:$0x1] %v16
  $region1: #{brain_dqn_forward.1} parent=0
    #allocation3 [shape = 'u8[49152]{0}', space=vmem, size = 0xc000, scoped, tag = 'input window, operand 2, single buffered']
    #allocation4 [shape = 's32[1]{0}', space=sflag, size = 0x4, scoped, tag = 'scoped memory for brain_dqn_forward.1']
    #allocation5 [shape = 'u8[196608]{0}', space=vmem, size = 0x30000, scoped, tag = 'input window, operand 5, single buffered']
    #allocation6 [shape = 's32[1]{0}', space=sflag, size = 0x4, scoped, tag = 'scoped memory for brain_dqn_forward.1']
    #allocation7 [shape = 'u8[65536]{0}', space=vmem, size = 0x10000, scoped, tag = 'input window, operand 7, single buffered']
    %18 = vsyncpa [#allocation4], 0
    %19 = vsyncpa [#allocation6], 0
    // Predicated region
    $region2: #{brain_dqn_forward.1} parent=1 // pred_check
      _
    $region3: #{brain_dqn_forward.1} parent=1 // pred_check_branch
      %21 = sbr.rel (0) target = $region5
    $region4: #{brain_dqn_forward.1} parent=1 // pred_region
      _
    $region5: #{brain_dqn_forward.1} parent=1 // pred_fallthru
      _
    // Predicated region
    $region6: #{brain_dqn_forward.1} parent=1 // pred_check
      _
    $region7: #{brain_dqn_forward.1} parent=1 // pred_check_branch
      %23 = sbr.rel (0) target = $region9
    $region8: #{brain_dqn_forward.1} parent=1 // pred_region
      _
    $region9: #{brain_dqn_forward.1} parent=1 // pred_fallthru
      _
    // Predicated region
    $region10: #{brain_dqn_forward.1} parent=1 // pred_check
      _
    $region11: #{brain_dqn_forward.1} parent=1 // pred_check_branch
      %25 = sbr.rel (0) target = $region13
    $region12: #{brain_dqn_forward.1} parent=1 // pred_region
      %27 = vsyncadd [#allocation4], 0
      %s28 = sshll.u32 %s2, 4
      %s29 = int_to_ptr.hbm [resolvable:$true] %s28
      %s30 = sshll.u32 [#allocation3], 4
      %s31 = int_to_ptr.vmem [resolvable:$true] %s30
      %36 = dma.hbm_to_vmem [thread:$0]  %s29, 1536, %s31, [#allocation4], 192, 192, 12
    $region13: #{brain_dqn_forward.1} parent=1 // pred_fallthru
      _
    // Predicated region
    $region14: #{brain_dqn_forward.1} parent=1 // pred_check
      _
    $region15: #{brain_dqn_forward.1} parent=1 // pred_check_branch
      %38 = sbr.rel (0) target = $region17
    $region16: #{brain_dqn_forward.1} parent=1 // pred_region
      _
    $region17: #{brain_dqn_forward.1} parent=1 // pred_fallthru
      _
    // Predicated region
    $region18: #{brain_dqn_forward.1} parent=1 // pred_check
      _
    $region19: #{brain_dqn_forward.1} parent=1 // pred_check_branch
      %40 = sbr.rel (0) target = $region21
    $region20: #{brain_dqn_forward.1} parent=1 // pred_region
      _
    $region21: #{brain_dqn_forward.1} parent=1 // pred_fallthru
      _
    // Predicated region
    $region22: #{brain_dqn_forward.1} parent=1 // pred_check
      _
    $region23: #{brain_dqn_forward.1} parent=1 // pred_check_branch
      %42 = sbr.rel (0) target = $region25
    $region24: #{brain_dqn_forward.1} parent=1 // pred_region
      %44 = vsyncadd [#allocation6], 0
      %s45 = sshll.u32 %s5, 4
      %s46 = int_to_ptr.hbm [resolvable:$true] %s45
      %s47 = sshll.u32 [#allocation5], 4
      %s48 = int_to_ptr.vmem [resolvable:$true] %s47
      %53 = dma.hbm_to_vmem [thread:$0]  %s46, 6144, %s48, [#allocation6], 128, 128, 8
    $region25: #{brain_dqn_forward.1} parent=1 // pred_fallthru
      _
    // Predicated region
    $region26: #{brain_dqn_forward.1} parent=1 // pred_check
      _
    $region27: #{brain_dqn_forward.1} parent=1 // pred_check_branch
      %55 = sbr.rel (0) target = $region29
    $region28: #{brain_dqn_forward.1} parent=1 // pred_region
      _
    $region29: #{brain_dqn_forward.1} parent=1 // pred_fallthru
      _
    // Predicated region
    $region30: #{brain_dqn_forward.1} parent=1 // pred_check
      _
    $region31: #{brain_dqn_forward.1} parent=1 // pred_check_branch
      %57 = sbr.rel (0) target = $region33
    $region32: #{brain_dqn_forward.1} parent=1 // pred_region
      %59 = vsyncadd [#allocation6], 0
      %s60 = sshll.u32 %s7, 4
      %s61 = int_to_ptr.hbm [resolvable:$true] %s60
      %s62 = sshll.u32 [#allocation7], 4
      %s63 = int_to_ptr.vmem [resolvable:$true] %s62
      %68 = dma.hbm_to_vmem [thread:$0]  %s61, 2048, %s63, [#allocation6], 128, 128, 8
    $region33: #{brain_dqn_forward.1} parent=1 // pred_fallthru
      _
    // Predicated region
    $region34: #{brain_dqn_forward.1} parent=1 // pred_check
      _
    $region35: #{brain_dqn_forward.1} parent=1 // pred_check_branch
      %70 = sbr.rel (0) target = $region37
    $region36: #{brain_dqn_forward.1} parent=1 // pred_region
      _
    $region37: #{brain_dqn_forward.1} parent=1 // pred_fallthru
      _
    // Predicated region
    $region38: #{brain_dqn_forward.1} parent=1 // pred_check
      _
    $region39: #{brain_dqn_forward.1} parent=1 // pred_check_branch
      %72 = sbr.rel (0) target = $region41
    $region40: #{brain_dqn_forward.1} parent=1 // pred_region
      _
    $region41: #{brain_dqn_forward.1} parent=1 // pred_fallthru
      _
    // Predicated region
    $region42: #{brain_dqn_forward.1} parent=1 // pred_check
      _
    $region43: #{brain_dqn_forward.1} parent=1 // pred_check_branch
      %74 = sbr.rel (0) target = $region45
    $region44: #{brain_dqn_forward.1} parent=1 // pred_region
      _
    $region45: #{brain_dqn_forward.1} parent=1 // pred_fallthru
      _
    // Predicated region
    $region46: #{brain_dqn_forward.1} parent=1 // pred_check
      _
    $region47: #{brain_dqn_forward.1} parent=1 // pred_check_branch
      %76 = sbr.rel (0) target = $region49
    $region48: #{brain_dqn_forward.1} parent=1 // pred_region
      %78 = dma.done [#allocation4], 1536
    $region49: #{brain_dqn_forward.1} parent=1 // pred_fallthru
      _
    // Predicated region
    $region50: #{brain_dqn_forward.1} parent=1 // pred_check
      _
    $region51: #{brain_dqn_forward.1} parent=1 // pred_check_branch
      %80 = sbr.rel (0) target = $region53
    $region52: #{brain_dqn_forward.1} parent=1 // pred_region
      %82 = dma.done [#allocation6], 6144
    $region53: #{brain_dqn_forward.1} parent=1 // pred_fallthru
      _
    // Predicated region
    $region54: #{brain_dqn_forward.1} parent=1 // pred_check
      _
    $region55: #{brain_dqn_forward.1} parent=1 // pred_check_branch
      %84 = sbr.rel (0) target = $region57
    $region56: #{brain_dqn_forward.1} parent=1 // pred_region
      %86 = dma.done [#allocation6], 2048
    $region57: #{brain_dqn_forward.1} parent=1 // pred_fallthru
      _
    %v88 = vld [vmem:[%s0] sm:$0xf]
    %v89 = vld [vmem:[#allocation3] sm:$0xff]
    %v90 = vld [vmem:[#allocation3 + $0x8] sm:$0xf]
    %v91 = vld [vmem:[#allocation3 + $0xc] sm:$0xff]
    %v92 = vld [vmem:[#allocation3 + $0x14] sm:$0xf]
    %v93 = vld [vmem:[#allocation3 + $0x18] sm:$0xff]
    %v94 = vld [vmem:[#allocation3 + $0x20] sm:$0xf]
    %v95 = vld [vmem:[#allocation3 + $0x24] sm:$0xff]
    %v96 = vld [vmem:[#allocation3 + $0x2c] sm:$0xf]
    %v97 = vld [vmem:[#allocation3 + $0x30] sm:$0xff]
    %v98 = vld [vmem:[#allocation3 + $0x38] sm:$0xf]
    %v99 = vld [vmem:[#allocation3 + $0x3c] sm:$0xff]
    %v100 = vld [vmem:[#allocation3 + $0x44] sm:$0xf]
    %v101 = vld [vmem:[#allocation3 + $0x48] sm:$0xff]
    %v102 = vld [vmem:[#allocation3 + $0x50] sm:$0xf]
    %v103 = vld [vmem:[#allocation3 + $0x54] sm:$0x33]
    %v104 = vld [vmem:[#allocation3 + $0x5c] sm:$0x3]
    %v105 = vld [vmem:[%s1] sm:$0xf]
    %v106 = vld [vmem:[%s3] sm:$0x77]
    %v107 = vld [vmem:[%s3 + $0x8] sm:$0x7]
    %v110 = vunpack.c.l.b16 %v106
    %v111 = vunpack.c.h.b16 %v106
    %v112 = vunpack.c.l.b16 %v107
    %v113 = vpack.c.b16 %v110, %v110
    %v114 = vpack.c.b16 %v111, %v111
    %v115 = vpack.c.b16 %v112, %v112
    %vm116 = vcmask 39936
    %v118 = vsel %vm116, %v105, 0
    %vm120 = vcmask 1041408
    %vm121 = vcmask 1042432
    %v122 = vsel %vm120, 4294967295, 65535
    %v123 = vsel %vm121, %v122, 0
    %v125 = vand.u32 %v113, %v123
    %v128 = vand.u32 %v114, %v123
    %v131 = vand.u32 %v115, %v123
    %133 = vmatpush.bf16.msra.mxu0 0
    %134 = vmatpush.bf16.msra.mxu0 0
    %135 = vmatpush.bf16.msra.mxu0 0
    %136 = vmatpush.bf16.msra.mxu0 0
    %137 = vmatpush.bf16.msra.mxu0 0
    %138 = vmatpush.bf16.msra.mxu0 0
    %139 = vmatpush.bf16.msra.mxu0 0
    %140 = vmatpush.bf16.msra.mxu0 %v125
    %141 = vmatmul.bf16.gmra.mxu0 %v118
    %v142 = vpop.f32.mrf.mxu0
    %v143 = vadd.f32 0.0, %v142
    %v144 = vpop.f32.mrf.mxu0
    %145 = vdwg.mxu0
    %146 = vmatpush.bf16.msra.mxu0 0
    %147 = vmatpush.bf16.msra.mxu0 0
    %148 = vmatpush.bf16.msra.mxu0 0
    %149 = vmatpush.bf16.msra.mxu0 0
    %150 = vmatpush.bf16.msra.mxu0 0
    %151 = vmatpush.bf16.msra.mxu0 0
    %152 = vmatpush.bf16.msra.mxu0 0
    %153 = vmatpush.bf16.msra.mxu0 %v128
    %154 = vmatmul.bf16.gmra.mxu0 %v118
    %v155 = vpop.f32.mrf.mxu0
    %v156 = vadd.f32 0.0, %v155
    %v157 = vpop.f32.mrf.mxu0
    %158 = vdwg.mxu0
    %159 = vmatpush.bf16.msra.mxu0 0
    %160 = vmatpush.bf16.msra.mxu0 0
    %161 = vmatpush.bf16.msra.mxu0 0
    %162 = vmatpush.bf16.msra.mxu0 0
    %163 = vmatpush.bf16.msra.mxu0 0
    %164 = vmatpush.bf16.msra.mxu0 0
    %165 = vmatpush.bf16.msra.mxu0 0
    %166 = vmatpush.bf16.msra.mxu0 %v131
    %167 = vmatmul.bf16.gmra.mxu0 %v118
    %v168 = vpop.f32.mrf.mxu0
    %v169 = vadd.f32 0.0, %v168
    %v170 = vpop.f32.mrf.mxu0
    %171 = vdwg.mxu0
    %v188 = vunpack.c.l.b16 %v89
    %v189 = vunpack.c.h.b16 %v89
    %v190 = vunpack.c.l.b16 %v90
    %v191 = vunpack.c.l.b16 %v91
    %v192 = vunpack.c.h.b16 %v91
    %v193 = vunpack.c.l.b16 %v92
    %v194 = vunpack.c.l.b16 %v93
    %v195 = vunpack.c.h.b16 %v93
    %v196 = vunpack.c.l.b16 %v94
    %v197 = vunpack.c.l.b16 %v95
    %v198 = vunpack.c.h.b16 %v95
    %v199 = vunpack.c.l.b16 %v96
    %v200 = vunpack.c.l.b16 %v97
    %v201 = vunpack.c.h.b16 %v97
    %v202 = vunpack.c.l.b16 %v98
    %v203 = vunpack.c.l.b16 %v99
    %v204 = vunpack.c.h.b16 %v99
    %v205 = vunpack.c.l.b16 %v100
    %v206 = vunpack.c.l.b16 %v101
    %v207 = vunpack.c.h.b16 %v101
    %v208 = vunpack.c.l.b16 %v102
    %v209 = vunpack.c.l.b16 %v103
    %v210 = vunpack.c.h.b16 %v103
    %v211 = vunpack.c.l.b16 %v104
    %v212 = vpack.c.b16 %v191, %v188
    %v213 = vpack.c.b16 %v192, %v189
    %v214 = vpack.c.b16 %v193, %v190
    %v215 = vpack.c.b16 %v197, %v194
    %v216 = vpack.c.b16 %v198, %v195
    %v217 = vpack.c.b16 %v199, %v196
    %v218 = vpack.c.b16 %v203, %v200
    %v219 = vpack.c.b16 %v204, %v201
    %v220 = vpack.c.b16 %v205, %v202
    %v221 = vpack.c.b16 %v209, %v206
    %v222 = vpack.c.b16 %v210, %v207
    %v223 = vpack.c.b16 %v211, %v208
    %vm233 = vcmask 482304
    %v235 = vsel %vm233, %v88, 0
    %vm237 = vcmask 1044480
    %vm238 = vcmask 1045504
    %v239 = vsel %vm237, 4294967295, 65535
    %v240 = vsel %vm238, %v239, 0
    %v242 = vand.u32 %v221, %v240
    %v245 = vand.u32 %v222, %v240
    %v248 = vand.u32 %v223, %v240
    %250 = vmatpush.bf16.msra.mxu0 0
    %251 = vmatpush.bf16.msra.mxu0 0
    %252 = vmatpush.bf16.msra.mxu0 0
    %253 = vmatpush.bf16.msra.mxu0 0
    %254 = vmatpush.bf16.msra.mxu0 %v242
    %255 = vmatpush.bf16.msra.mxu0 %v218
    %256 = vmatpush.bf16.msra.mxu0 %v215
    %257 = vmatpush.bf16.msra.mxu0 %v212
    %258 = vmatmul.bf16.gmra.mxu0 %v235
    %v259 = vpop.f32.mrf.mxu0
    %v260 = vadd.f32 %v143, %v259
    %v261 = vpop.f32.mrf.mxu0
    %262 = vdwg.mxu0
    %263 = vmatpush.bf16.msra.mxu0 0
    %264 = vmatpush.bf16.msra.mxu0 0
    %265 = vmatpush.bf16.msra.mxu0 0
    %266 = vmatpush.bf16.msra.mxu0 0
    %267 = vmatpush.bf16.msra.mxu0 %v245
    %268 = vmatpush.bf16.msra.mxu0 %v219
    %269 = vmatpush.bf16.msra.mxu0 %v216
    %270 = vmatpush.bf16.msra.mxu0 %v213
    %271 = vmatmul.bf16.gmra.mxu0 %v235
    %v272 = vpop.f32.mrf.mxu0
    %v273 = vadd.f32 %v156, %v272
    %v274 = vpop.f32.mrf.mxu0
    %275 = vdwg.mxu0
    %276 = vmatpush.bf16.msra.mxu0 0
    %277 = vmatpush.bf16.msra.mxu0 0
    %278 = vmatpush.bf16.msra.mxu0 0
    %279 = vmatpush.bf16.msra.mxu0 0
    %280 = vmatpush.bf16.msra.mxu0 %v248
    %281 = vmatpush.bf16.msra.mxu0 %v220
    %282 = vmatpush.bf16.msra.mxu0 %v217
    %283 = vmatpush.bf16.msra.mxu0 %v214
    %284 = vmatmul.bf16.gmra.mxu0 %v235
    %v285 = vpop.f32.mrf.mxu0
    %v286 = vadd.f32 %v169, %v285
    %v287 = vpop.f32.mrf.mxu0
    %288 = vdwg.mxu0
    %v289 = vld [vmem:[%s4] sm:$0x7]
    %v291 = vperm.slane %v289, 0
    %v292 = vperm.slane %v289, 1
    %v293 = vperm.slane %v289, 2
    %v297 = vadd.f32 %v260, %v291
    %v298 = vadd.f32 %v273, %v292
    %v299 = vadd.f32 %v286, %v293
    %v300 = vxor.u32 %v297, 2147483648
    %v301 = vxor.u32 %v298, 2147483648
    %v302 = vxor.u32 %v299, 2147483648
    %v303 = vmul.f32 %v300, 1.442695
    %v304 = vpow.pop %v303
    %v305 = vmul.f32 %v301, 1.442695
    %v306 = vpow.pop %v305
    %v307 = vmul.f32 %v302, 1.442695
    %v308 = vpow.pop %v307
    %v309 = vadd.f32 %v304, 1.0
    %v310 = vadd.f32 %v306, 1.0
    %v311 = vadd.f32 %v308, 1.0
    %v312 = vrcp.pop %v309
    %v313 = vmul.f32 %v309, %v312
    %v314 = vsub.f32 1.0, %v313
    %v315 = vmul.f32 %v312, %v314
    %v316 = vadd.f32 %v312, %v315
    %vm317 = vweird.f32 %v309
    %vm318 = vweird.f32 %v312
    %vm319 = vmor %vm317, %vm318
    %v320 = vsel %vm319, %v312, %v316
    %v321 = vand.u32 2147483647, %v309
    %vm322 = vcmp.eq.f32.partialorder %v321, 8.507059e+37
    %v323 = vand.u32 %v309, 2147483648
    %v324 = vor.u32 1.1754944e-38, %v323
    %v325 = vsel %vm322, %v324, %v320
    %v326 = vmul.f32 1.0, %v325
    %v327 = vrcp.pop %v310
    %v328 = vmul.f32 %v310, %v327
    %v329 = vsub.f32 1.0, %v328
    %v330 = vmul.f32 %v327, %v329
    %v331 = vadd.f32 %v327, %v330
    %vm332 = vweird.f32 %v310
    %vm333 = vweird.f32 %v327
    %vm334 = vmor %vm332, %vm333
    %v335 = vsel %vm334, %v327, %v331
    %v336 = vand.u32 2147483647, %v310
    %vm337 = vcmp.eq.f32.partialorder %v336, 8.507059e+37
    %v338 = vand.u32 %v310, 2147483648
    %v339 = vor.u32 1.1754944e-38, %v338
    %v340 = vsel %vm337, %v339, %v335
    %v341 = vmul.f32 1.0, %v340
    %v342 = vrcp.pop %v311
    %v343 = vmul.f32 %v311, %v342
    %v344 = vsub.f32 1.0, %v343
    %v345 = vmul.f32 %v342, %v344
    %v346 = vadd.f32 %v342, %v345
    %vm347 = vweird.f32 %v311
    %vm348 = vweird.f32 %v342
    %vm349 = vmor %vm347, %vm348
    %v350 = vsel %vm349, %v342, %v346
    %v351 = vand.u32 2147483647, %v311
    %vm352 = vcmp.eq.f32.partialorder %v351, 8.507059e+37
    %v353 = vand.u32 %v311, 2147483648
    %v354 = vor.u32 1.1754944e-38, %v353
    %v355 = vsel %vm352, %v354, %v350
    %v356 = vmul.f32 1.0, %v355
    %v357 = vld [vmem:[#allocation5] sm:$0xff]
    %v358 = vld [vmem:[#allocation5 + $0x8] sm:$0xff]
    %v359 = vld [vmem:[#allocation5 + $0x10] sm:$0xff]
    %v360 = vld [vmem:[#allocation5 + $0x18] sm:$0xff]
    %v361 = vld [vmem:[#allocation5 + $0x20] sm:$0xff]
    %v362 = vld [vmem:[#allocation5 + $0x28] sm:$0xff]
    %v363 = vld [vmem:[#allocation5 + $0x30] sm:$0xff]
    %v364 = vld [vmem:[#allocation5 + $0x38] sm:$0xff]
    %v365 = vld [vmem:[#allocation5 + $0x40] sm:$0xff]
    %v366 = vld [vmem:[#allocation5 + $0x48] sm:$0xff]
    %v367 = vld [vmem:[#allocation5 + $0x50] sm:$0xff]
    %v368 = vld [vmem:[#allocation5 + $0x58] sm:$0xff]
    %v369 = vld [vmem:[#allocation5 + $0x60] sm:$0xff]
    %v370 = vld [vmem:[#allocation5 + $0x68] sm:$0xff]
    %v371 = vld [vmem:[#allocation5 + $0x70] sm:$0xff]
    %v372 = vld [vmem:[#allocation5 + $0x78] sm:$0xff]
    %v373 = vld [vmem:[#allocation5 + $0x80] sm:$0xff]
    %v374 = vld [vmem:[#allocation5 + $0x88] sm:$0xff]
    %v375 = vld [vmem:[#allocation5 + $0x90] sm:$0xff]
    %v376 = vld [vmem:[#allocation5 + $0x98] sm:$0xff]
    %v377 = vld [vmem:[#allocation5 + $0xa0] sm:$0xff]
    %v378 = vld [vmem:[#allocation5 + $0xa8] sm:$0xff]
    %v379 = vld [vmem:[#allocation5 + $0xb0] sm:$0xff]
    %v380 = vld [vmem:[#allocation5 + $0xb8] sm:$0xff]
    %v381 = vld [vmem:[#allocation5 + $0xc0] sm:$0xff]
    %v382 = vld [vmem:[#allocation5 + $0xc8] sm:$0xff]
    %v383 = vld [vmem:[#allocation5 + $0xd0] sm:$0xff]
    %v384 = vld [vmem:[#allocation5 + $0xd8] sm:$0xff]
    %v385 = vld [vmem:[#allocation5 + $0xe0] sm:$0xff]
    %v386 = vld [vmem:[#allocation5 + $0xe8] sm:$0xff]
    %v387 = vld [vmem:[#allocation5 + $0xf0] sm:$0xff]
    %v388 = vld [vmem:[#allocation5 + $0xf8] sm:$0xff]
    %v389 = vld [vmem:[#allocation5 + $0x100] sm:$0xff]
    %v390 = vld [vmem:[#allocation5 + $0x108] sm:$0xff]
    %v391 = vld [vmem:[#allocation5 + $0x110] sm:$0xff]
    %v392 = vld [vmem:[#allocation5 + $0x118] sm:$0xff]
    %v393 = vld [vmem:[#allocation5 + $0x120] sm:$0xff]
    %v394 = vld [vmem:[#allocation5 + $0x128] sm:$0xff]
    %v395 = vld [vmem:[#allocation5 + $0x130] sm:$0xff]
    %v396 = vld [vmem:[#allocation5 + $0x138] sm:$0xff]
    %v397 = vld [vmem:[#allocation5 + $0x140] sm:$0xff]
    %v398 = vld [vmem:[#allocation5 + $0x148] sm:$0xff]
    %v399 = vld [vmem:[#allocation5 + $0x150] sm:$0xff]
    %v400 = vld [vmem:[#allocation5 + $0x158] sm:$0xff]
    %v401 = vld [vmem:[#allocation5 + $0x160] sm:$0xff]
    %v402 = vld [vmem:[#allocation5 + $0x168] sm:$0xff]
    %v403 = vld [vmem:[#allocation5 + $0x170] sm:$0xff]
    %v404 = vld [vmem:[#allocation5 + $0x178] sm:$0xff]
    %v405 = vld [vmem:[%s6] sm:$0x1]
    %v407 = vperm.slane %v405, 0
    %409 = vmatpush.msra.mxu0 %v372
    %410 = vmatpush.msra.mxu0 %v371
    %411 = vmatpush.msra.mxu0 %v370
    %412 = vmatpush.msra.mxu0 %v369
    %413 = vmatpush.msra.mxu0 %v368
    %414 = vmatpush.msra.mxu0 %v367
    %415 = vmatpush.msra.mxu0 %v366
    %416 = vmatpush.msra.mxu0 %v365
    %417 = vmatpush.msra.mxu0 %v364
    %418 = vmatpush.msra.mxu0 %v363
    %419 = vmatpush.msra.mxu0 %v362
    %420 = vmatpush.msra.mxu0 %v361
    %421 = vmatpush.msra.mxu0 %v360
    %422 = vmatpush.msra.mxu0 %v359
    %423 = vmatpush.msra.mxu0 %v358
    %424 = vmatpush.msra.mxu0 %v357
    %425 = vmatmul.f32.gmra.mxu0 %v326
    %v426 = vpop.f32.mrf.mxu0
    %v427 = vadd.f32 %v407, %v426
    %428 = vdwg.mxu0
    %429 = vmatpush.msra.mxu0 %v388
    %430 = vmatpush.msra.mxu0 %v387
    %431 = vmatpush.msra.mxu0 %v386
    %432 = vmatpush.msra.mxu0 %v385
    %433 = vmatpush.msra.mxu0 %v384
    %434 = vmatpush.msra.mxu0 %v383
    %435 = vmatpush.msra.mxu0 %v382
    %436 = vmatpush.msra.mxu0 %v381
    %437 = vmatpush.msra.mxu0 %v380
    %438 = vmatpush.msra.mxu0 %v379
    %439 = vmatpush.msra.mxu0 %v378
    %440 = vmatpush.msra.mxu0 %v377
    %441 = vmatpush.msra.mxu0 %v376
    %442 = vmatpush.msra.mxu0 %v375
    %443 = vmatpush.msra.mxu0 %v374
    %444 = vmatpush.msra.mxu0 %v373
    %445 = vmatmul.f32.gmra.mxu0 %v341
    %v446 = vpop.f32.mrf.mxu0
    %v447 = vadd.f32 %v427, %v446
    %448 = vdwg.mxu0
    %449 = vmatpush.msra.mxu0 %v404
    %450 = vmatpush.msra.mxu0 %v403
    %451 = vmatpush.msra.mxu0 %v402
    %452 = vmatpush.msra.mxu0 %v401
    %453 = vmatpush.msra.mxu0 %v400
    %454 = vmatpush.msra.mxu0 %v399
    %455 = vmatpush.msra.mxu0 %v398
    %456 = vmatpush.msra.mxu0 %v397
    %457 = vmatpush.msra.mxu0 %v396
    %458 = vmatpush.msra.mxu0 %v395
    %459 = vmatpush.msra.mxu0 %v394
    %460 = vmatpush.msra.mxu0 %v393
    %461 = vmatpush.msra.mxu0 %v392
    %462 = vmatpush.msra.mxu0 %v391
    %463 = vmatpush.msra.mxu0 %v390
    %464 = vmatpush.msra.mxu0 %v389
    %465 = vmatmul.f32.gmra.mxu0 %v356
    %v466 = vpop.f32.mrf.mxu0
    %v467 = vadd.f32 %v447, %v466
    %468 = vdwg.mxu0
    %v469 = vxor.u32 %v467, 2147483648
    %v470 = vmul.f32 %v469, 1.442695
    %v471 = vpow.pop %v470
    %v472 = vadd.f32 %v471, 1.0
    %v473 = vrcp.pop %v472
    %v474 = vmul.f32 %v472, %v473
    %v475 = vsub.f32 1.0, %v474
    %v476 = vmul.f32 %v473, %v475
    %v477 = vadd.f32 %v473, %v476
    %vm478 = vweird.f32 %v472
    %vm479 = vweird.f32 %v473
    %vm480 = vmor %vm478, %vm479
    %v481 = vsel %vm480, %v473, %v477
    %v482 = vand.u32 2147483647, %v472
    %vm483 = vcmp.eq.f32.partialorder %v482, 8.507059e+37
    %v484 = vand.u32 %v472, 2147483648
    %v485 = vor.u32 1.1754944e-38, %v484
    %v486 = vsel %vm483, %v485, %v481
    %v487 = vmul.f32 1.0, %v486
    %v488 = vld [vmem:[#allocation7] sm:$0xff]
    %v489 = vld [vmem:[#allocation7 + $0x8] sm:$0xff]
    %v490 = vld [vmem:[#allocation7 + $0x10] sm:$0xff]
    %v491 = vld [vmem:[#allocation7 + $0x18] sm:$0xff]
    %v492 = vld [vmem:[#allocation7 + $0x20] sm:$0xff]
    %v493 = vld [vmem:[#allocation7 + $0x28] sm:$0xff]
    %v494 = vld [vmem:[#allocation7 + $0x30] sm:$0xff]
    %v495 = vld [vmem:[#allocation7 + $0x38] sm:$0xff]
    %v496 = vld [vmem:[#allocation7 + $0x40] sm:$0xff]
    %v497 = vld [vmem:[#allocation7 + $0x48] sm:$0xff]
    %v498 = vld [vmem:[#allocation7 + $0x50] sm:$0xff]
    %v499 = vld [vmem:[#allocation7 + $0x58] sm:$0xff]
    %v500 = vld [vmem:[#allocation7 + $0x60] sm:$0xff]
    %v501 = vld [vmem:[#allocation7 + $0x68] sm:$0xff]
    %v502 = vld [vmem:[#allocation7 + $0x70] sm:$0xff]
    %v503 = vld [vmem:[#allocation7 + $0x78] sm:$0xff]
    %v504 = vld [vmem:[%s8] sm:$0x1]
    %v506 = vperm.slane %v504, 0
    %508 = vmatpush.msra.mxu0 %v503
    %509 = vmatpush.msra.mxu0 %v502
    %510 = vmatpush.msra.mxu0 %v501
    %511 = vmatpush.msra.mxu0 %v500
    %512 = vmatpush.msra.mxu0 %v499
    %513 = vmatpush.msra.mxu0 %v498
    %514 = vmatpush.msra.mxu0 %v497
    %515 = vmatpush.msra.mxu0 %v496
    %516 = vmatpush.msra.mxu0 %v495
    %517 = vmatpush.msra.mxu0 %v494
    %518 = vmatpush.msra.mxu0 %v493
    %519 = vmatpush.msra.mxu0 %v492
    %520 = vmatpush.msra.mxu0 %v491
    %521 = vmatpush.msra.mxu0 %v490
    %522 = vmatpush.msra.mxu0 %v489
    %523 = vmatpush.msra.mxu0 %v488
    %524 = vmatmul.f32.gmra.mxu0 %v487
    %v525 = vpop.f32.mrf.mxu0
    %v526 = vadd.f32 %v506, %v525
    %527 = vdwg.mxu0
    %v528 = vxor.u32 %v526, 2147483648
    %v529 = vmul.f32 %v528, 1.442695
    %v530 = vpow.pop %v529
    %v531 = vadd.f32 %v530, 1.0
    %v532 = vrcp.pop %v531
    %v533 = vmul.f32 %v531, %v532
    %v534 = vsub.f32 1.0, %v533
    %v535 = vmul.f32 %v532, %v534
    %v536 = vadd.f32 %v532, %v535
    %vm537 = vweird.f32 %v531
    %vm538 = vweird.f32 %v532
    %vm539 = vmor %vm537, %vm538
    %v540 = vsel %vm539, %v532, %v536
    %v541 = vand.u32 2147483647, %v531
    %vm542 = vcmp.eq.f32.partialorder %v541, 8.507059e+37
    %v543 = vand.u32 %v531, 2147483648
    %v544 = vor.u32 1.1754944e-38, %v543
    %v545 = vsel %vm542, %v544, %v540
    %v546 = vmul.f32 1.0, %v545
    %v547 = vld [vmem:[%s9] sm:$0x1]
    %v549 = vperm.slane %v547, 0
    %v551 = vmul.f32 %v546, %v549
    %552 = vadd.xlane.f32.xlu0 %v551
    %v553 = vpop.xlane.xlu0 %552
    %v554 = vld [vmem:[#allocation2] sm:$0x1]
    %v556 = vperm.slane %v554, 0
    %v558 = vadd.f32 %v553, %v556
    %vm559 = vcmask 7168
    %560 = vst.msk [vmem:[%s11] sm:$0xff] %vm559, %v558
    // Predicated region
    $region58: #{brain_dqn_forward.1} parent=1 // pred_check
      _
    $region59: #{brain_dqn_forward.1} parent=1 // pred_check_branch
      %562 = sbr.rel (0) target = $region61
    $region60: #{brain_dqn_forward.1} parent=1 // pred_region
      _
    $region61: #{brain_dqn_forward.1} parent=1 // pred_fallthru
      _
    // Predicated region
    $region62: #{brain_dqn_forward.1} parent=1 // pred_check
      _
    $region63: #{brain_dqn_forward.1} parent=1 // pred_check_branch
      %564 = sbr.rel (0) target = $region65
    $region64: #{brain_dqn_forward.1} parent=1 // pred_region
      _
    $region65: #{brain_dqn_forward.1} parent=1 // pred_fallthru
      _
    %565 = vsyncpa [#allocation4], 1
    %566 = vsyncpa [#allocation6], 1

</llo_original>
